<compile_context>
chip_gen: v7x
topology: tpu7x:2x2x1
jax: 0.10.0
libtpu: 0.0.40
codegen_flags: <defaults>
</compile_context>

<pallas_src>
import jax
import jax.numpy as jnp
from jax.experimental import pallas as pl
from jax.experimental.pallas import tpu as pltpu  # noqa: F401  (TPU backend)


def _fused_linear_kernel(x_ref, w_ref, b_ref, o_ref):
    # x: (rows, F_in), w: (F_in, 2*F_out) already transposed in the wrapper,
    # b: (1, 2*F_out).  y = x @ W + b  (== PyTorch F.linear for both layers).
    y = jnp.dot(x_ref[...], w_ref[...], preferred_element_type=jnp.float32)
    y = y + b_ref[...]
    o_ref[...] = y.astype(o_ref.dtype)  # no-op cast when dtypes already match


def dual_linear(x, w0, b0, w1, b1):
    """x: (..., F_in); w*: (F_out, F_in); b*: (F_out,).
    Returns (y0, y1), each of shape (..., F_out)."""
    orig_shape = x.shape
    f_in = orig_shape[-1]
    f_out = w0.shape[0]
    rows = 1
    for d in orig_shape[:-1]:
        rows *= d

    x2d = x.reshape(rows, f_in)
    # Fuse the two linears: W_cat (F_in, 2*F_out), b_cat (1, 2*F_out).
    # Transpose happens in the wrapper (free layout plumbing, no XLU work
    # inside the kernel).
    w_cat = jnp.concatenate([w0, w1], axis=0).T
    b_cat = jnp.concatenate([b0, b1], axis=0).reshape(1, 2 * f_out)

    full = lambda shape: pl.BlockSpec(shape, lambda: tuple(0 for _ in shape))

    y = pl.pallas_call(
        _fused_linear_kernel,
        out_shape=jax.ShapeDtypeStruct((rows, 2 * f_out), x.dtype),
        in_specs=[
            full((rows, f_in)),
            full((f_in, 2 * f_out)),
            full((1, 2 * f_out)),
        ],
        out_specs=full((rows, 2 * f_out)),
    )(x2d, w_cat, b_cat)

    new_shape = orig_shape[:-1] + (f_out,)
    y0 = y[:, :f_out].reshape(new_shape)
    y1 = y[:, f_out:].reshape(new_shape)
    return y0, y1


if __name__ == "__main__":
    key = jax.random.PRNGKey(0)
    k_x, k_w0, k_b0, k_w1, k_b1 = jax.random.split(key, 5)

    # Input like torch.randn(3, 2, 2)
    x1 = jax.random.normal(k_x, (3, 2, 2), dtype=jnp.float32)

    # nn.Linear(2, 2) params: weight (out, in) = (2, 2), bias (2,)
    # Deterministic init mimicking PyTorch's uniform(-1/sqrt(fan_in), 1/sqrt(fan_in)).
    bound = 1.0 / jnp.sqrt(2.0)
    w0 = jax.random.uniform(k_w0, (2, 2), jnp.float32, -bound, bound)
    b0 = jax.random.uniform(k_b0, (2,), jnp.float32, -bound, bound)
    w1 = jax.random.uniform(k_w1, (2, 2), jnp.float32, -bound, bound)
    b1 = jax.random.uniform(k_b1, (2,), jnp.float32, -bound, bound)

    v1, v2 = dual_linear(x1, w0, b0, w1, b1)
    jax.block_until_ready((v1, v2))

    # Reference check in plain JAX (PyTorch F.linear: y = x @ W.T + b)
    ref1 = jnp.einsum("bij,kj->bik", x1, w0) + b0
    ref2 = jnp.einsum("bij,kj->bik", x1, w1) + b1
    assert v1.shape == (3, 2, 2) and v2.shape == (3, 2, 2)
    assert jnp.allclose(v1, ref1, atol=1e-5), "v1 mismatch"
    assert jnp.allclose(v2, ref2, atol=1e-5), "v2 mismatch"

    print("KERNEL_OK")
</pallas_src>

<mosaic_0001>
module attributes {stable_mosaic.version = 11 : i64} {
  func.func @_fused_linear_kernel(%arg0: memref<6x2xf32, #tpu.memory_space<vmem>>, %arg1: memref<2x4xf32, #tpu.memory_space<vmem>>, %arg2: memref<1x4xf32, #tpu.memory_space<vmem>>, %arg3: memref<6x4xf32, #tpu.memory_space<vmem>>) attributes {dimension_semantics = [], scalar_prefetch = 0 : i64, scratch_operands = 0 : i64, tpu.core_type = #tpu.core_type<tc>} {
    %c0 = arith.constant 0 : index
    %c0_0 = arith.constant 0 : index
    %0 = vector.load %arg0[%c0, %c0_0] : memref<6x2xf32, #tpu.memory_space<vmem>>, vector<6x2xf32>
    %c0_1 = arith.constant 0 : index
    %c0_2 = arith.constant 0 : index
    %1 = vector.load %arg1[%c0_1, %c0_2] : memref<2x4xf32, #tpu.memory_space<vmem>>, vector<2x4xf32>
    %cst = arith.constant dense<0.000000e+00> : vector<6x4xf32>
    %2 = tpu.matmul %0, %1, %cst {dimension_numbers = #tpu.dot_dimension_numbers<[1], [0], [0], [1], [0, 0, 1, 1], [], []>} : vector<6x2xf32>, vector<2x4xf32>, vector<6x4xf32> -> vector<6x4xf32>
    %c0_3 = arith.constant 0 : index
    %c0_4 = arith.constant 0 : index
    %3 = vector.load %arg2[%c0_3, %c0_4] : memref<1x4xf32, #tpu.memory_space<vmem>>, vector<1x4xf32>
    %4 = vector.broadcast %3 : vector<1x4xf32> to vector<6x4xf32>
    %5 = arith.addf %2, %4 : vector<6x4xf32>
    %c0_5 = arith.constant 0 : index
    %c0_6 = arith.constant 0 : index
    %6 = vector.load %arg3[%c0_5, %c0_6] : memref<6x4xf32, #tpu.memory_space<vmem>>, vector<6x4xf32>
    tpu.vector_store %arg3[%c0_5, %c0_6], %5 {strides = array<i32>} : memref<6x4xf32, #tpu.memory_space<vmem>>, vector<6x4xf32>,
    return
  }
}

</mosaic_0001>

<llo_original>
// kernel: tpu_custom_call.1
$region0: #{tpu_custom_call.1}
  #allocation0 [shape = 'u32[]', space=smem, size = 0x4, offset = 0x4, fixed_abs, tag = 'smem constant byte address 0x4 - core index']
  #allocation1 [shape = 'u32[144,128]{1,0:T(1,128)}', space=vmem, size = 0x12000, scoped, tag = 'internal scratch']
  %s0 = inlined_call_operand.vmem [shape: f32[6,2], index: 0, kind: input, shape index: {}]
  %s1 = inlined_call_operand.vmem [shape: f32[2,4], index: 1, kind: input, shape index: {}]
  %s2 = inlined_call_operand.vmem [shape: f32[1,4], index: 2, kind: input, shape index: {}]
  %s3 = inlined_call_operand.vmem [shape: f32[6,4], index: 3, kind: output, shape index: {}]
  %s4 = sld [smem:[#allocation0]]
  $region22: #{tpu_custom_call.1} parent=0
    _
  %s6 = ssub.s32 1, %s4
  %s7 = scalar_select 0, %s6, %s4
  // Predicated region
  $region2: #{tpu_custom_call.1} parent=0 // pred_check
    _
  $region3: #{tpu_custom_call.1} parent=0 // pred_check_branch
    %9 = sbr.rel (0) target = $region5
  $region4: #{tpu_custom_call.1} parent=0 // pred_region
    _
  $region5: #{tpu_custom_call.1} parent=0 // pred_fallthru
    _
  // Predicated region
  $region6: #{tpu_custom_call.1} parent=0 // pred_check
    _
  $region7: #{tpu_custom_call.1} parent=0 // pred_check_branch
    %11 = sbr.rel (0) target = $region9
  $region8: #{tpu_custom_call.1} parent=0 // pred_region
    _
  $region9: #{tpu_custom_call.1} parent=0 // pred_fallthru
    _
  // Predicated region
  $region10: #{tpu_custom_call.1} parent=0 // pred_check
    _
  $region11: #{tpu_custom_call.1} parent=0 // pred_check_branch
    %13 = sbr.rel (0) target = $region13
  $region12: #{tpu_custom_call.1} parent=0 // pred_region
    _
  $region13: #{tpu_custom_call.1} parent=0 // pred_fallthru
    _
  %v14 = vld [vmem:[%s0] sm:$0x3f]
  %v15 = vld [vmem:[%s1] sm:$0x3]
  %v16 = vld [vmem:[%s2] sm:$0x1]
  %v18 = vlaneseq
  %v19 = vshrl.u32 %v18, 7
  %v20 = vsub.s32 0, %v19
  %v21 = vrot.slane %v16, %v20
  %vm23 = vcmask 15360
  %v25 = vsel %vm23, %v14, 0
  %vm27 = vcmask 1041408
  %v29 = vsel %vm27, %v15, 0
  %31 = vmatprep.subr.mxu0 0.0
  %32 = vmatpush1.msra.mxu0 %v29
  %33 = vmatprep.subr.mxu0 0.0
  %34 = vmatpush1.msra.mxu0 0.0
  %35 = vmatprep.subr.mxu0 0.0
  %36 = vmatpush1.msra.mxu0 0.0
  %37 = vmatprep.subr.mxu0 0.0
  %38 = vmatpush1.msra.mxu0 0.0
  %39 = vmatprep.subr.mxu0 0.0
  %40 = vmatpush1.msra.mxu0 0.0
  %41 = vmatprep.subr.mxu0 0.0
  %42 = vmatpush1.msra.mxu0 0.0
  %43 = vmatprep.subr.mxu0 0.0
  %44 = vmatpush1.msra.mxu0 0.0
  %45 = vmatprep.subr.mxu0 0.0
  %46 = vmatpush1.msra.mxu0 0.0
  %47 = vmatprep.subr.mxu0 0.0
  %48 = vmatpush1.msra.mxu0 0.0
  %49 = vmatprep.subr.mxu0 0.0
  %50 = vmatpush1.msra.mxu0 0.0
  %51 = vmatprep.subr.mxu0 0.0
  %52 = vmatpush1.msra.mxu0 0.0
  %53 = vmatprep.subr.mxu0 0.0
  %54 = vmatpush1.msra.mxu0 0.0
  %55 = vmatprep.subr.mxu0 0.0
  %56 = vmatpush1.msra.mxu0 0.0
  %57 = vmatprep.subr.mxu0 0.0
  %58 = vmatpush1.msra.mxu0 0.0
  %59 = vmatprep.subr.mxu0 0.0
  %60 = vmatpush1.msra.mxu0 0.0
  %61 = vmatprep.subr.mxu0 0.0
  %62 = vmatpush1.msra.mxu0 0.0
  %63 = vmatprep.subr.mxu0 0.0
  %64 = vmatpush1.msra.mxu0 0.0
  %65 = vmatprep.subr.mxu0 0.0
  %66 = vmatpush1.msra.mxu0 0.0
  %67 = vmatprep.subr.mxu0 0.0
  %68 = vmatpush1.msra.mxu0 0.0
  %69 = vmatprep.subr.mxu0 0.0
  %70 = vmatpush1.msra.mxu0 0.0
  %71 = vmatprep.subr.mxu0 0.0
  %72 = vmatpush1.msra.mxu0 0.0
  %73 = vmatprep.subr.mxu0 0.0
  %74 = vmatpush1.msra.mxu0 0.0
  %75 = vmatprep.subr.mxu0 0.0
  %76 = vmatpush1.msra.mxu0 0.0
  %77 = vmatprep.subr.mxu0 0.0
  %78 = vmatpush1.msra.mxu0 0.0
  %79 = vmatprep.subr.mxu0 0.0
  %80 = vmatpush1.msra.mxu0 0.0
  %81 = vmatprep.subr.mxu0 0.0
  %82 = vmatpush1.msra.mxu0 0.0
  %83 = vmatprep.subr.mxu0 0.0
  %84 = vmatpush1.msra.mxu0 0.0
  %85 = vmatprep.subr.mxu0 0.0
  %86 = vmatpush1.msra.mxu0 0.0
  %87 = vmatprep.subr.mxu0 0.0
  %88 = vmatpush1.msra.mxu0 0.0
  %89 = vmatprep.subr.mxu0 0.0
  %90 = vmatpush1.msra.mxu0 0.0
  %91 = vmatprep.subr.mxu0 0.0
  %92 = vmatpush1.msra.mxu0 0.0
  %93 = vmatprep.subr.mxu0 0.0
  %94 = vmatpush1.msra.mxu0 0.0
  %95 = vmatprep.mubr.f32.mxu0 0.0
  %96 = vmatmul.mubr.f32.gmra.mrb[0].mxu0 %v25
  %v97 = vpop.f32.mrb[0].mxu0
  %v98 = vadd.f32 %v21, %v97
  %v99 = vpop.f32.mrb[0].mxu0
  %100 = vdwg.mxu0
  %vm101 = vcmask 29696
  %102 = vst.msk [vmem:[%s3] sm:$0x3f] %vm101, %v98
  // Predicated region
  $region14: #{tpu_custom_call.1} parent=0 // pred_check
    _
  $region15: #{tpu_custom_call.1} parent=0 // pred_check_branch
    %104 = sbr.rel (0) target = $region17
  $region16: #{tpu_custom_call.1} parent=0 // pred_region
    _
  $region17: #{tpu_custom_call.1} parent=0 // pred_fallthru
    _
  // Predicated region
  $region18: #{tpu_custom_call.1} parent=0 // pred_check
    _
  $region19: #{tpu_custom_call.1} parent=0 // pred_check_branch
    %106 = sbr.rel (0) target = $region21
  $region20: #{tpu_custom_call.1} parent=0 // pred_region
    _
  $region21: #{tpu_custom_call.1} parent=0 // pred_fallthru
    _

</llo_original>
